<compile_context>
chip_gen: v6e
topology: v6e:2x2x1
jax: 0.10.0
libtpu: 0.0.40
codegen_flags: <defaults>
</compile_context>

<pallas_src>
import jax
import jax.numpy as jnp
from jax.experimental import pallas as pl
from jax.experimental.pallas import tpu as pltpu

BN_EPS = 1e-5
_NCORES = 2                      # leading "parallel" axis size for pass 1


def _vmem_budgets():
    """(vmem_limit_bytes, per-step tile budget) gated on physical VMEM size."""
    vmem_phys = 64 * 1024 * 1024
    try:
        info = pltpu.get_tpu_info()
        vmem_phys = int(getattr(info, "vmem_capacity_bytes", vmem_phys))
    except Exception:
        pass
    if vmem_phys >= 96 * 1024 * 1024:               # v5e / v6e: 128 MiB VMEM
        return 96 * 1024 * 1024, 40 * 1024 * 1024
    return 32 * 1024 * 1024, 16 * 1024 * 1024       # v7x: 64 MiB physical


def _choose_tile_m(m, c_in, c_pad, in_bytes, tile_budget):
    """Largest M tile (multiple of 8) that fits the budget; M is padded to it."""
    per_row = 2 * (2 * c_in * in_bytes) + 3 * c_pad * 4   # dbl-buffered in + temps/out
    cap = max(8, tile_budget // max(per_row, 1))
    want = ((pl.cdiv(m, _NCORES) + 7) // 8) * 8           # >= 1 tile per core
    limit = min(cap, max(8, want))
    for t in (2048, 1024, 512, 256, 128, 64, 32, 16, 8):
        if t <= limit:
            return t
    return 8


def _conv_stats_kernel(x_ref, w_ref, sum_ref, sq_ref):
    """ReLU + fused stride-2 1x1 convs (one matmul) + per-channel sum / sumsq."""
    i = pl.program_id(1)

    a = jnp.maximum(x_ref[...], 0)                 # ReLU in the input dtype (exact)
    y = jnp.dot(a, w_ref[...], preferred_element_type=jnp.float32)

    # Channel sums on the (tiny-K elsewhere) MXU via an 8-row ones matmul; the
    # MXU processes >=8 LHS sublanes per pass anyway, so 8 identical result
    # rows cost the same as 1 and keep the (8, C_pad) accumulator block legal.
    ones8 = jnp.ones((8, y.shape[0]), jnp.float32)
    tile_sum = jnp.dot(ones8, y, preferred_element_type=jnp.float32)
    tile_sq = jnp.dot(ones8, y * y, preferred_element_type=jnp.float32)

    @pl.when(i == 0)
    def _():
        sum_ref[...] = jnp.zeros_like(sum_ref)
        sq_ref[...] = jnp.zeros_like(sq_ref)

    # f32 accumulators, resident across the inner "arbitrary" M axis; one
    # (8, C_pad) block per core along the leading "parallel" axis.
    # TODO(synk): switch to a compensated / two-pass variance if activation
    # means get large or M gets huge (E[x^2]-E[x]^2 cancellation in f32).
    sum_ref[...] += tile_sum
    sq_ref[...] += tile_sq


def _conv_affine_kernel(x_ref, w_ref, scale_ref, shift_ref, out_ref):
    """Recompute ReLU + fused conv and apply the folded BN affine."""
    a = jnp.maximum(x_ref[...], 0)
    y = jnp.dot(a, w_ref[...], preferred_element_type=jnp.float32)
    out_ref[...] = (y * scale_ref[...] + shift_ref[...]).astype(out_ref.dtype)


def factorized_reduce(x, w1, w2, gamma, beta, *, matmul_dtype=jnp.float32):
    """x: (N, C_in, H, W) f32 NCHW; w1, w2: (C_half, C_in); gamma/beta: (C_out,)."""
    N, C_in, H, W = x.shape
    C_half = w1.shape[0]
    C_out = 2 * C_half
    assert H % 2 == 0 and W % 2 == 0, "matches the PyTorch module only for even H, W"

    Ho, Wo = H // 2, W // 2
    M = N * Ho * Wo
    K = 2 * C_in

    C_pad = max(128, ((C_out + 127) // 128) * 128)       # == C_out if already %128
    in_bytes = jnp.dtype(matmul_dtype).itemsize

    vmem_limit, tile_budget = _vmem_budgets()
    TM = _choose_tile_m(M, C_in, C_pad, in_bytes, tile_budget)
    M_pad = ((M + _NCORES * TM - 1) // (_NCORES * TM)) * (_NCORES * TM)
    n_tiles = M_pad // TM
    tiles_per_core = n_tiles // _NCORES

    # stride-2 1x1 conv == channel matmul over every-other spatial position.
    # Cast to matmul_dtype BEFORE the layout copies (bf16 path moves 2 B/elt).
    # TODO(synk): keep activations channels-last in the surrounding model to
    # drop these NCHW<->NHWC layout copies (extra HBM round trips) entirely.
    x1f = jnp.transpose(x[:, :, ::2, ::2].astype(matmul_dtype),
                        (0, 2, 3, 1)).reshape(M, C_in)
    x2f = jnp.transpose(x[:, :, 1::2, 1::2].astype(matmul_dtype),
                        (0, 2, 3, 1)).reshape(M, C_in)
    x12 = jnp.concatenate([x1f, x2f], axis=1)            # (M, 2*C_in), one stream
    if M_pad != M:
        x12 = jnp.pad(x12, ((0, M_pad - M), (0, 0)))     # zero rows: no stat impact

    # Fused zero-padded weight: rows [0,C_in) x cols [0,C_half) = w1^T,
    # rows [C_in,2C_in) x cols [C_half,C_out) = w2^T. Pad lanes stay exactly 0
    # so padded output columns are 0 and are sliced off at the end.
    w = jnp.zeros((K, C_pad), matmul_dtype)
    w = w.at[:C_in, :C_half].set(w1.T.astype(matmul_dtype))
    w = w.at[C_in:, C_half:C_out].set(w2.T.astype(matmul_dtype))

    g = jnp.zeros((C_pad,), jnp.float32).at[:C_out].set(gamma.astype(jnp.float32))
    b = jnp.zeros((C_pad,), jnp.float32).at[:C_out].set(beta.astype(jnp.float32))

    # ---- pass 1: stats only (ReLU + fused conv + per-channel sum / sumsq) ----
    cost1 = pl.CostEstimate(
        flops=int(2 * M_pad * K * C_pad + 2 * 2 * 8 * M_pad * C_pad + M_pad * C_pad),
        transcendentals=0,
        bytes_accessed=int(M_pad * K * in_bytes + K * C_pad * in_bytes
                           + 2 * _NCORES * 8 * C_pad * 4))
    acc_sum, acc_sq = pl.pallas_call(
        _conv_stats_kernel,
        out_shape=(jax.ShapeDtypeStruct((_NCORES * 8, C_pad), jnp.float32),
                   jax.ShapeDtypeStruct((_NCORES * 8, C_pad), jnp.float32)),
        grid=(_NCORES, tiles_per_core),
        in_specs=[
            pl.BlockSpec((TM, K), lambda c, i: (c * tiles_per_core + i, 0)),
            pl.BlockSpec((K, C_pad), lambda c, i: (0, 0)),    # VMEM-resident weight
        ],
        out_specs=(pl.BlockSpec((8, C_pad), lambda c, i: (c, 0)),  # per-core acc
                   pl.BlockSpec((8, C_pad), lambda c, i: (c, 0))),
        compiler_params=pltpu.CompilerParams(
            dimension_semantics=("parallel", "arbitrary"),   # both v7x TCs on pass 1
            vmem_limit_bytes=vmem_limit),
        cost_estimate=cost1,
    )(x12, w)

    # Each core's 8 accumulator rows are identical copies of its partial sum.
    ssum = acc_sum[0::8, :].sum(axis=0)
    ssq = acc_sq[0::8, :].sum(axis=0)
    mean = ssum / M                                        # real M (pad rows are 0)
    var = jnp.maximum(ssq / M - mean * mean, 0.0)          # biased, training-mode var
    scale_v = g * jax.lax.rsqrt(var + BN_EPS)
    shift_v = b - mean * scale_v
    scale = scale_v.reshape(1, C_pad)
    shift = shift_v.reshape(1, C_pad)

    # ---- pass 2: recompute conv fused with the BN affine, write final output ----
    # If profiling ever shows this DMA-exposed (tiny per-tile compute when C_in
    # is small), add pipeline_mode=pl.Buffered(3) on the x input spec.
    cost2 = pl.CostEstimate(
        flops=int(2 * M_pad * K * C_pad + 2 * M_pad * C_pad),
        transcendentals=0,
        bytes_accessed=int(M_pad * K * in_bytes + K * C_pad * in_bytes
                           + M_pad * C_pad * 4 + 2 * C_pad * 4))
    out_pad = pl.pallas_call(
        _conv_affine_kernel,
        out_shape=jax.ShapeDtypeStruct((M_pad, C_pad), jnp.float32),
        grid=(n_tiles,),
        in_specs=[pl.BlockSpec((TM, K), lambda i: (i, 0)),
                  pl.BlockSpec((K, C_pad), lambda i: (0, 0)),
                  pl.BlockSpec((1, C_pad), lambda i: (0, 0)),
                  pl.BlockSpec((1, C_pad), lambda i: (0, 0))],
        out_specs=pl.BlockSpec((TM, C_pad), lambda i: (i, 0)),
        compiler_params=pltpu.CompilerParams(
            dimension_semantics=("parallel",),               # shards across TCs
            vmem_limit_bytes=vmem_limit),
        cost_estimate=cost2,
    )(x12, w, scale, shift)

    out = out_pad
    if M_pad != M or C_pad != C_out:
        out = out_pad[:M, :C_out]
    return out.reshape(N, Ho, Wo, C_out).transpose(0, 3, 1, 2)


def factorized_reduce_reference(x, w1, w2, gamma, beta):
    """Pure-JAX reference mirroring the PyTorch forward (training-mode BN)."""
    a = jnp.maximum(x, 0.0)
    y1 = jnp.einsum('nchw,oc->nohw', a[:, :, ::2, ::2], w1)
    y2 = jnp.einsum('nchw,oc->nohw', a[:, :, 1::2, 1::2], w2)
    y = jnp.concatenate([y1, y2], axis=1)
    mean = y.mean(axis=(0, 2, 3), keepdims=True)
    var = ((y - mean) ** 2).mean(axis=(0, 2, 3), keepdims=True)
    return ((y - mean) / jnp.sqrt(var + BN_EPS)
            * gamma.reshape(1, -1, 1, 1) + beta.reshape(1, -1, 1, 1))


if __name__ == "__main__":
    # Small shapes consistent with the module: N=2, C_in=4, H=W=16, C_out=8.
    N, C_in, H, W = 2, 4, 16, 16
    C_out = 8
    C_half = C_out // 2

    key = jax.random.PRNGKey(0)
    kx, kw1, kw2, kg, kb = jax.random.split(key, 5)

    x = jax.random.normal(kx, (N, C_in, H, W), dtype=jnp.float32)
    # Conv2d(C_in, C_out//2, 1) weight is (C_half, C_in, 1, 1); stored squeezed.
    w1 = jax.random.normal(kw1, (C_half, C_in), dtype=jnp.float32) * 0.5
    w2 = jax.random.normal(kw2, (C_half, C_in), dtype=jnp.float32) * 0.5
    gamma = 1.0 + 0.1 * jax.random.normal(kg, (C_out,), dtype=jnp.float32)
    beta = 0.1 * jax.random.normal(kb, (C_out,), dtype=jnp.float32)

    ref = factorized_reduce_reference(x, w1, w2, gamma, beta)

    # f32 path: tight check against the pure-JAX reference.
    out = jax.block_until_ready(factorized_reduce(x, w1, w2, gamma, beta))
    assert out.shape == (N, C_out, H // 2, W // 2), out.shape
    err = float(jnp.max(jnp.abs(out - ref)))
    assert jnp.allclose(out, ref, atol=1e-4, rtol=1e-4), err

    # bf16 matmul-input path (halves HBM traffic on all generations; the MXU is
    # natively bf16 on v5e/v6e/v7x). BN stats and normalization stay in f32.
    out_bf16 = jax.block_until_ready(
        factorized_reduce(x, w1, w2, gamma, beta, matmul_dtype=jnp.bfloat16))
    err_bf16 = float(jnp.max(jnp.abs(out_bf16 - ref)))
    assert jnp.allclose(out_bf16, ref, atol=5e-2, rtol=5e-2), err_bf16

    print("KERNEL_OK")
</pallas_src>

<mosaic_0001>
module attributes {stable_mosaic.version = 11 : i64} {
  func.func @_conv_stats_kernel(%arg0: i32, %arg1: i32, %arg2: memref<64x8xf32, #tpu.memory_space<vmem>>, %arg3: memref<8x128xf32, #tpu.memory_space<vmem>>, %arg4: memref<8x128xf32, #tpu.memory_space<vmem>>, %arg5: memref<8x128xf32, #tpu.memory_space<vmem>>) attributes {dimension_semantics = [#tpu.dimension_semantics<parallel>, #tpu.dimension_semantics<arbitrary>], iteration_bounds = array<i64: 2, 1>, scalar_prefetch = 0 : i64, scratch_operands = 0 : i64, tpu.core_type = #tpu.core_type<tc>, window_params = [{transform_indices = @transform_0, window_bounds = array<i64: 64, 8>}, {pipeline_mode = #tpu.pipeline_mode<synchronous>, transform_indices = @transform_1, window_bounds = array<i64: 8, 128>}, {transform_indices = @transform_2, window_bounds = array<i64: 8, 128>}, {transform_indices = @transform_3, window_bounds = array<i64: 8, 128>}]} {
    %c0 = arith.constant 0 : index
    %c0_0 = arith.constant 0 : index
    %0 = vector.load %arg2[%c0, %c0_0] : memref<64x8xf32, #tpu.memory_space<vmem>>, vector<64x8xf32>
    %cst = arith.constant 0.000000e+00 : f32
    %1 = vector.broadcast %cst : f32 to vector<64x8xf32>
    %2 = arith.maximumf %0, %1 : vector<64x8xf32>
    %c0_1 = arith.constant 0 : index
    %c0_2 = arith.constant 0 : index
    %3 = vector.load %arg3[%c0_1, %c0_2] : memref<8x128xf32, #tpu.memory_space<vmem>>, vector<8x128xf32>
    %cst_3 = arith.constant dense<0.000000e+00> : vector<64x128xf32>
    %4 = tpu.matmul %2, %3, %cst_3 {dimension_numbers = #tpu.dot_dimension_numbers<[1], [0], [0], [1], [0, 0, 1, 1], [], []>} : vector<64x8xf32>, vector<8x128xf32>, vector<64x128xf32> -> vector<64x128xf32>
    %cst_4 = arith.constant 1.000000e+00 : f32
    %5 = vector.broadcast %cst_4 : f32 to vector<8x64xf32>
    %cst_5 = arith.constant dense<0.000000e+00> : vector<8x128xf32>
    %6 = tpu.matmul %5, %4, %cst_5 {dimension_numbers = #tpu.dot_dimension_numbers<[1], [0], [0], [1], [0, 0, 1, 1], [], []>} : vector<8x64xf32>, vector<64x128xf32>, vector<8x128xf32> -> vector<8x128xf32>
    %7 = arith.mulf %4, %4 : vector<64x128xf32>
    %cst_6 = arith.constant dense<0.000000e+00> : vector<8x128xf32>
    %8 = tpu.matmul %5, %7, %cst_6 {dimension_numbers = #tpu.dot_dimension_numbers<[1], [0], [0], [1], [0, 0, 1, 1], [], []>} : vector<8x64xf32>, vector<64x128xf32>, vector<8x128xf32> -> vector<8x128xf32>
    %c0_i32 = arith.constant 0 : i32
    %9 = arith.cmpi eq, %arg1, %c0_i32 : i32
    %10 = arith.extui %9 : i1 to i32
    %c0_i32_7 = arith.constant 0 : i32
    %11 = arith.cmpi ne, %10, %c0_i32_7 : i32
    scf.if %11 {
      %cst_16 = arith.constant 0.000000e+00 : f32
      %18 = vector.broadcast %cst_16 : f32 to vector<8x128xf32>
      %c0_17 = arith.constant 0 : index
      %c0_18 = arith.constant 0 : index
      %19 = vector.load %arg4[%c0_17, %c0_18] : memref<8x128xf32, #tpu.memory_space<vmem>>, vector<8x128xf32>
      tpu.vector_store %arg4[%c0_17, %c0_18], %18 {strides = array<i32>} : memref<8x128xf32, #tpu.memory_space<vmem>>, vector<8x128xf32>,
      %cst_19 = arith.constant 0.000000e+00 : f32
      %20 = vector.broadcast %cst_19 : f32 to vector<8x128xf32>
      %c0_20 = arith.constant 0 : index
      %c0_21 = arith.constant 0 : index
      %21 = vector.load %arg5[%c0_20, %c0_21] : memref<8x128xf32, #tpu.memory_space<vmem>>, vector<8x128xf32>
      tpu.vector_store %arg5[%c0_20, %c0_21], %20 {strides = array<i32>} : memref<8x128xf32, #tpu.memory_space<vmem>>, vector<8x128xf32>,
    } else {
    }
    %c0_8 = arith.constant 0 : index
    %c0_9 = arith.constant 0 : index
    %12 = vector.load %arg4[%c0_8, %c0_9] : memref<8x128xf32, #tpu.memory_space<vmem>>, vector<8x128xf32>
    %13 = arith.addf %12, %6 : vector<8x128xf32>
    %c0_10 = arith.constant 0 : index
    %c0_11 = arith.constant 0 : index
    %14 = vector.load %arg4[%c0_10, %c0_11] : memref<8x128xf32, #tpu.memory_space<vmem>>, vector<8x128xf32>
    tpu.vector_store %arg4[%c0_10, %c0_11], %13 {strides = array<i32>} : memref<8x128xf32, #tpu.memory_space<vmem>>, vector<8x128xf32>,
    %c0_12 = arith.constant 0 : index
    %c0_13 = arith.constant 0 : index
    %15 = vector.load %arg5[%c0_12, %c0_13] : memref<8x128xf32, #tpu.memory_space<vmem>>, vector<8x128xf32>
    %16 = arith.addf %15, %8 : vector<8x128xf32>
    %c0_14 = arith.constant 0 : index
    %c0_15 = arith.constant 0 : index
    %17 = vector.load %arg5[%c0_14, %c0_15] : memref<8x128xf32, #tpu.memory_space<vmem>>, vector<8x128xf32>
    tpu.vector_store %arg5[%c0_14, %c0_15], %16 {strides = array<i32>} : memref<8x128xf32, #tpu.memory_space<vmem>>, vector<8x128xf32>,
    return
  }
  func.func @transform_0(%arg0: i32, %arg1: i32) -> (i32, i32) {
    %c1_i32 = arith.constant 1 : i32
    %0 = arith.muli %arg0, %c1_i32 : i32
    %1 = arith.addi %0, %arg1 : i32
    %c0_i32 = arith.constant 0 : i32
    %c0_i32_0 = arith.constant 0 : i32
    return %1, %c0_i32 : i32, i32
  }
  func.func @transform_1(%arg0: i32, %arg1: i32) -> (i32, i32) {
    %c0_i32 = arith.constant 0 : i32
    %c0_i32_0 = arith.constant 0 : i32
    %c0_i32_1 = arith.constant 0 : i32
    return %c0_i32, %c0_i32_0 : i32, i32
  }
  func.func @transform_2(%arg0: i32, %arg1: i32) -> (i32, i32) {
    %c0_i32 = arith.constant 0 : i32
    %c0_i32_0 = arith.constant 0 : i32
    return %arg0, %c0_i32 : i32, i32
  }
  func.func @transform_3(%arg0: i32, %arg1: i32) -> (i32, i32) {
    %c0_i32 = arith.constant 0 : i32
    %c0_i32_0 = arith.constant 0 : i32
    return %arg0, %c0_i32 : i32, i32
  }
}

</mosaic_0001>

<llo_original>
// kernel: tpu_custom_call.1
$region0: #{tpu_custom_call.1}
  #allocation0 [shape = 'u32[]', space=smem, size = 0x4, offset = 0x4, fixed_abs, tag = 'smem constant byte address 0x4 - core index']
  #allocation1 [shape = 'u32[144,128]{1,0:T(1,128)}', space=vmem, size = 0x12000, scoped, tag = 'internal scratch']
  %s0 = inlined_call_operand.vmem [shape: f32[128,8], index: 0, kind: input, shape index: {}]
  %s1 = inlined_call_operand.vmem [shape: f32[8,128], index: 1, kind: input, shape index: {}]
  %s2 = inlined_call_operand.hbm [shape: f32[16,128], index: 2, kind: output, shape index: {0}]
  %s3 = inlined_call_operand.hbm [shape: f32[16,128], index: 3, kind: output, shape index: {1}]
  %4 = xla_tuple %s2, %s3
  %s5 = sld [smem:[#allocation0]]
  $region53: #{tpu_custom_call.1} parent=0
    _
  %s7 = ssub.s32 1, %s5
  %s8 = scalar_select 0, %s7, %s5
  $region1: #{tpu_custom_call.1} parent=0
    #allocation2 [shape = 'u8[8192]{0}', space=vmem, size = 0x2000, scoped, tag = 'output window, operand 0']
    #allocation3 [shape = 's32[2]{0}', space=sflag, size = 0x8, scoped, tag = 'scoped memory for tpu_custom_call.1']
    #allocation4 [shape = 'u8[8192]{0}', space=vmem, size = 0x2000, scoped, tag = 'output window, operand 1']
    #allocation5 [shape = 's32[2]{0}', space=sflag, size = 0x8, scoped, tag = 'scoped memory for tpu_custom_call.1']
    %9 = vsyncpa [#allocation3], 0
    %s10 = scalar_lea.sflag [#allocation3], 1
    %11 = vsyncpa %s10, 0
    %12 = vsyncpa [#allocation5], 0
    %s13 = scalar_lea.sflag [#allocation5], 1
    %14 = vsyncpa %s13, 0
    loop: start=0, step=1, limit=4
    $region2: #{tpu_custom_call.1} parent=1 // loop_pre_header
      _
    $region3: #{tpu_custom_call.1} parent=1 // loop_header
      %s16 = sphi 0, %s20
      %p17 = scmp.ge.s32.totalorder %s16, 4
      %s23 = sphi 0, %s35
      %s24 = sphi 0, %s31
      %s25 = sphi 0, %s23
      %s26 = sphi 0, %s24
      %s27 = sphi 0, %s25
      %s28 = sphi 0, %s26
      %s40 = sphi 0, %s42
      %s43 = sphi 0, %s40
      %s44 = sphi 0, %s43
      %s60 = sphi 0, %s44
      %s64 = sphi 0, %s64
      %s66 = sphi 0, %s64
      %s67 = sphi 0, %s66
      %s81 = sphi 0, %s67
      %s87 = sphi 0, %s89
      %s90 = sphi 0, %s87
      %s91 = sphi 0, %s90
      %s107 = sphi 0, %s91
      %s113 = sphi 0, %s115
      %s116 = sphi 0, %s113
      %s117 = sphi 0, %s116
      %s133 = sphi 0, %s117
    $region4: #{tpu_custom_call.1} parent=1 // loop_header_branch
      %19 = sbr.rel (%p17) target = $region8
    $region5: #{tpu_custom_call.1} parent=1 // loop_body
      %s21 = ssub.s32 %s16, 1
      %s22 = ssub.s32 %s16, 2
      %s29 = sadd.s32 1, %s24
      %p30 = scmp.ge.s32.totalorder %s29, 1
      %s31 = scalar_select %p30, 0, %s29
      %s32 = sadd.s32 1, %s23
      %s33 = scalar_select %p30, %s32, %s23
      %p34 = scmp.ge.s32.totalorder %s33, 2
      %s35 = scalar_select %p34, 0, %s33
      %s36 = sadd.s32 %s23, %s24
      %s37 = sadd.s32 %s35, %s31
      %s38 = ssub.s32 %s36, %s37
      %p39 = scmp.eq.s32.totalorder %s38, 0
      %s41 = sadd.s32 %s40, 1
      %s42 = scalar_select %p39, %s40, %s41
      %p45 = pneg %p39
      %p46 = scmp.eq.s32.totalorder %s16, 1
      %p47 = por %p45, %p46
      %p48 = scmp.ne.s32.totalorder %s40, %s43
      %p49 = scmp.eq.s32.totalorder %s16, 0
      %p50 = por %p48, %p49
      %p51 = scmp.ne.s32.totalorder %s40, %s43
      %p52 = scmp.eq.s32.totalorder %s21, 1
      %p53 = por %p51, %p52
      %p54 = scmp.ne.s32.totalorder %s43, %s44
      %p55 = scmp.eq.s32.totalorder %s21, 0
      %p56 = por %p54, %p55
      %p57 = scmp.ne.s32.totalorder %s43, %s44
      %p58 = scmp.eq.s32.totalorder %s22, 1
      %p59 = por %p57, %p58
      %p61 = scmp.ne.s32.totalorder %s44, %s60
      %p62 = scmp.eq.s32.totalorder %s22, 0
      %p63 = por %p61, %p62
      %s65 = sadd.s32 %s64, 1
      %p68 = scmp.eq.s32.totalorder %s16, 1
      %p69 = scmp.ne.s32.totalorder %s64, %s66
      %p70 = scmp.eq.s32.totalorder %s16, 0
      %p71 = por %p69, %p70
      %p72 = scmp.ne.s32.totalorder %s64, %s66
      %p73 = scmp.eq.s32.totalorder %s21, 1
      %p74 = por %p72, %p73
      %p75 = scmp.ne.s32.totalorder %s66, %s67
      %p76 = scmp.eq.s32.totalorder %s21, 0
      %p77 = por %p75, %p76
      %p78 = scmp.ne.s32.totalorder %s66, %s67
      %p79 = scmp.eq.s32.totalorder %s22, 1
      %p80 = por %p78, %p79
      %p82 = scmp.ne.s32.totalorder %s67, %s81
      %p83 = scmp.eq.s32.totalorder %s22, 0
      %p84 = por %p82, %p83
      %s85 = ssub.s32 %s23, %s35
      %p86 = scmp.eq.s32.totalorder %s85, 0
      %s88 = sadd.s32 %s87, 1
      %s89 = scalar_select %p86, %s87, %s88
      %p92 = pneg %p86
      %p93 = scmp.eq.s32.totalorder %s16, 1
      %p94 = por %p92, %p93
      %p95 = scmp.ne.s32.totalorder %s87, %s90
      %p96 = scmp.eq.s32.totalorder %s16, 0
      %p97 = por %p95, %p96
      %p98 = scmp.ne.s32.totalorder %s87, %s90
      %p99 = scmp.eq.s32.totalorder %s21, 1
      %p100 = por %p98, %p99
      %p101 = scmp.ne.s32.totalorder %s90, %s91
      %p102 = scmp.eq.s32.totalorder %s21, 0
      %p103 = por %p101, %p102
      %p104 = scmp.ne.s32.totalorder %s90, %s91
      %p105 = scmp.eq.s32.totalorder %s22, 1
      %p106 = por %p104, %p105
      %p108 = scmp.ne.s32.totalorder %s91, %s107
      %p109 = scmp.eq.s32.totalorder %s22, 0
      %p110 = por %p108, %p109
      %s111 = ssub.s32 %s23, %s35
      %p112 = scmp.eq.s32.totalorder %s111, 0
      %s114 = sadd.s32 %s113, 1
      %s115 = scalar_select %p112, %s113, %s114
      %p118 = pneg %p112
      %p119 = scmp.eq.s32.totalorder %s16, 1
      %p120 = por %p118, %p119
      %p121 = scmp.ne.s32.totalorder %s113, %s116
      %p122 = scmp.eq.s32.totalorder %s16, 0
      %p123 = por %p121, %p122
      %p124 = scmp.ne.s32.totalorder %s113, %s116
      %p125 = scmp.eq.s32.totalorder %s21, 1
      %p126 = por %p124, %p125
      %p127 = scmp.ne.s32.totalorder %s116, %s117
      %p128 = scmp.eq.s32.totalorder %s21, 0
      %p129 = por %p127, %p128
      %p130 = scmp.ne.s32.totalorder %s116, %s117
      %p131 = scmp.eq.s32.totalorder %s22, 1
      %p132 = por %p130, %p131
      %p134 = scmp.ne.s32.totalorder %s117, %s133
      %p135 = scmp.eq.s32.totalorder %s22, 0
      %p136 = por %p134, %p135
      %p137 = scmp.le.s32.totalorder 1, %s16
      %p138 = scmp.lt.s32.totalorder %s16, 3
      %p139 = pnand %p137, %p138
      %p140 = pneg %p139
      // Predicated region
      $region9: #{tpu_custom_call.1} parent=5 // pred_check
        _
      $region10: #{tpu_custom_call.1} parent=5 // pred_check_branch
        %142 = sbr.rel (%p139) target = $region12
      $region11: #{tpu_custom_call.1} parent=5 // pred_region
        %s143 = ssub.s32 %s16, 1
        // Predicated region
        $region13: #{tpu_custom_call.1} parent=11 // pred_check
          %p144 = pneg %p77
        $region14: #{tpu_custom_call.1} parent=11 // pred_check_branch
          %146 = sbr.rel (%p144) target = $region16
        $region15: #{tpu_custom_call.1} parent=11 // pred_region
          _
        $region16: #{tpu_custom_call.1} parent=11 // pred_fallthru
          _
      $region12: #{tpu_custom_call.1} parent=5 // pred_fallthru
        _
      %p147 = scmp.lt.s32.totalorder %s16, 2
      // Predicated region
      $region17: #{tpu_custom_call.1} parent=5 // pred_check
        %p148 = pneg %p147
      $region18: #{tpu_custom_call.1} parent=5 // pred_check_branch
        %150 = sbr.rel (%p148) target = $region20
      $region19: #{tpu_custom_call.1} parent=5 // pred_region
        // Predicated region
        $region21: #{tpu_custom_call.1} parent=19 // pred_check
          %p151 = pneg %p50
        $region22: #{tpu_custom_call.1} parent=19 // pred_check_branch
          %153 = sbr.rel (%p151) target = $region24
        $region23: #{tpu_custom_call.1} parent=19 // pred_region
          %s154 = sadd.s32 %s23, %s24
          %s155 = smul.u32 8, %s154
          %p156 = scmp.lt.s32.totalorder %s155, 15
          %s157 = scalar_select %p156, %s155, 15
          %s158 = smul.addr %s157, 8
          %s159 = scalar_lea.vmem %s0, %s158
          %s160 = sadd.s32 %s23, %s24
          %s161 = smul.u32 8, %s160
        $region24: #{tpu_custom_call.1} parent=19 // pred_fallthru
          _
      $region20: #{tpu_custom_call.1} parent=5 // pred_fallthru
        _
      %p162 = scmp.le.s32.totalorder 1, %s16
      %p163 = scmp.lt.s32.totalorder %s16, 3
      %p164 = pnand %p162, %p163
      %p165 = pneg %p164
      // Predicated region
      $region25: #{tpu_custom_call.1} parent=5 // pred_check
        _
      $region26: #{tpu_custom_call.1} parent=5 // pred_check_branch
        %167 = sbr.rel (%p164) target = $region28
      $region27: #{tpu_custom_call.1} parent=5 // pred_region
        %s168 = ssub.s32 %s16, 1
        %s169 = sadd.s32 %s25, %s26
        %s170 = smul.u32 8, %s169
        %p171 = scmp.lt.s32.totalorder %s170, 15
        %s172 = scalar_select %p171, %s170, 15
        %s173 = smul.addr %s172, 8
        %s174 = scalar_lea.vmem %s0, %s173
        %p175 = pneg %p56
        %p176 = pneg %p53
        %p177 = pneg %p77
        %p178 = pneg %p74
        %p179 = pneg %p103
        %p180 = pneg %p100
        %s181 = sand.u32 %s90, 1
        %s182 = scalar_lea.sflag [#allocation3], %s181
        %s183 = sand.u32 %s90, 1
        %s184 = smul.addr %s183, 8
        %s185 = scalar_lea.vmem [#allocation2], %s184
        %p186 = pneg %p129
        %p187 = pneg %p126
        %s188 = sand.u32 %s116, 1
        %s189 = scalar_lea.sflag [#allocation5], %s188
        %s190 = sand.u32 %s116, 1
        %s191 = smul.addr %s190, 8
        %s192 = scalar_lea.vmem [#allocation4], %s191
        %s193 = sadd.s32 %s25, %s26
        %s194 = smul.u32 8, %s193
        %p195 = scmp.lt.s32.totalorder %s194, 15
        %s196 = scalar_select %p195, %s194, 15
        %s197 = smul.addr %s196, 8
        %s198 = scalar_lea.vmem %s0, %s197
        %s199 = sadd.s32 %s25, %s26
        %s200 = smul.u32 8, %s199
        %v201 = vld [vmem:[%s198] sm:$0xff]
        %v202 = vld [vmem:[%s198 + $0x8] sm:$0xff]
        %v203 = vld [vmem:[%s198 + $0x10] sm:$0xff]
        %v204 = vld [vmem:[%s198 + $0x18] sm:$0xff]
        %v205 = vld [vmem:[%s198 + $0x20] sm:$0xff]
        %v206 = vld [vmem:[%s198 + $0x28] sm:$0xff]
        %v207 = vld [vmem:[%s198 + $0x30] sm:$0xff]
        %v208 = vld [vmem:[%s198 + $0x38] sm:$0xff]
        %v209 = vmax.f32 %v201, 0.0
        %v210 = vmax.f32 %v202, 0.0
        %v211 = vmax.f32 %v203, 0.0
        %v212 = vmax.f32 %v204, 0.0
        %v213 = vmax.f32 %v205, 0.0
        %v214 = vmax.f32 %v206, 0.0
        %v215 = vmax.f32 %v207, 0.0
        %v216 = vmax.f32 %v208, 0.0
        %v217 = vld [vmem:[%s1] sm:$0xff]
        %vm218 = vcmask 64512
        %v220 = vsel %vm218, %v209, 0
        %v223 = vsel %vm218, %v210, 0
        %v226 = vsel %vm218, %v211, 0
        %v229 = vsel %vm218, %v212, 0
        %v232 = vsel %vm218, %v213, 0
        %v235 = vsel %vm218, %v214, 0
        %v238 = vsel %vm218, %v215, 0
        %v241 = vsel %vm218, %v216, 0
        %243 = vmatprep.subr.mxu0 0.0
        %244 = vmatpush1.msra.mxu0 0.0
        %245 = vmatprep.subr.mxu0 0.0
        %246 = vmatpush1.msra.mxu0 0.0
        %247 = vmatprep.subr.mxu0 0.0
        %248 = vmatpush1.msra.mxu0 0.0
        %249 = vmatprep.subr.mxu0 0.0
        %250 = vmatpush1.msra.mxu0 0.0
        %251 = vmatprep.subr.mxu0 0.0
        %252 = vmatpush1.msra.mxu0 0.0
        %253 = vmatprep.subr.mxu0 0.0
        %254 = vmatpush1.msra.mxu0 0.0
        %255 = vmatprep.subr.mxu0 0.0
        %256 = vmatpush1.msra.mxu0 0.0
        %257 = vmatprep.subr.mxu0 0.0
        %258 = vmatpush1.msra.mxu0 0.0
        %259 = vmatprep.subr.mxu0 0.0
        %260 = vmatpush1.msra.mxu0 0.0
        %261 = vmatprep.subr.mxu0 0.0
        %262 = vmatpush1.msra.mxu0 0.0
        %263 = vmatprep.subr.mxu0 0.0
        %264 = vmatpush1.msra.mxu0 0.0
        %265 = vmatprep.subr.mxu0 0.0
        %266 = vmatpush1.msra.mxu0 0.0
        %267 = vmatprep.subr.mxu0 0.0
        %268 = vmatpush1.msra.mxu0 0.0
        %269 = vmatprep.subr.mxu0 0.0
        %270 = vmatpush1.msra.mxu0 0.0
        %271 = vmatprep.subr.mxu0 0.0
        %272 = vmatpush1.msra.mxu0 0.0
        %273 = vmatprep.subr.mxu0 0.0
        %274 = vmatpush1.msra.mxu0 %v217
        %275 = vmatprep.subr.mxu0 0.0
        %276 = vmatpush2.msra.mxu0 0.0
        %277 = vmatprep.subr.mxu0 0.0
        %278 = vmatpush2.msra.mxu0 0.0
        %279 = vmatprep.subr.mxu0 0.0
        %280 = vmatpush2.msra.mxu0 0.0
        %281 = vmatprep.subr.mxu0 0.0
        %282 = vmatpush2.msra.mxu0 0.0
        %283 = vmatprep.subr.mxu0 0.0
        %284 = vmatpush2.msra.mxu0 0.0
        %285 = vmatprep.subr.mxu0 0.0
        %286 = vmatpush2.msra.mxu0 0.0
        %287 = vmatprep.subr.mxu0 0.0
        %288 = vmatpush2.msra.mxu0 0.0
        %289 = vmatprep.subr.mxu0 0.0
        %290 = vmatpush2.msra.mxu0 0.0
        %291 = vmatprep.subr.mxu0 0.0
        %292 = vmatpush2.msra.mxu0 0.0
        %293 = vmatprep.subr.mxu0 0.0
        %294 = vmatpush2.msra.mxu0 0.0
        %295 = vmatprep.subr.mxu0 0.0
        %296 = vmatpush2.msra.mxu0 0.0
        %297 = vmatprep.subr.mxu0 0.0
        %298 = vmatpush2.msra.mxu0 0.0
        %299 = vmatprep.subr.mxu0 0.0
        %300 = vmatpush2.msra.mxu0 0.0
        %301 = vmatprep.subr.mxu0 0.0
        %302 = vmatpush2.msra.mxu0 0.0
        %303 = vmatprep.subr.mxu0 0.0
        %304 = vmatpush2.msra.mxu0 0.0
        %305 = vmatprep.subr.mxu0 0.0
        %306 = vmatpush2.msra.mxu0 0.0
        %307 = vmatprep.mubr.f32.mxu0 0.0
        %308 = vmatmul.mubr.f32.gmra.mxu0 %v220
        %v309 = vpop.f32.mrf.mxu0
        %v310 = vadd.f32 0.0, %v309
        %v311 = vpop.f32.mrf.mxu0
        %312 = vmatprep.mubr.f32.mxu0 0.0
        %313 = vmatmul.mubr.f32.gmra.mxu0 %v223
        %v314 = vpop.f32.mrf.mxu0
        %v315 = vadd.f32 0.0, %v314
        %v316 = vpop.f32.mrf.mxu0
        %317 = vmatprep.mubr.f32.mxu0 0.0
        %318 = vmatmul.mubr.f32.gmra.mxu0 %v226
        %v319 = vpop.f32.mrf.mxu0
        %v320 = vadd.f32 0.0, %v319
        %v321 = vpop.f32.mrf.mxu0
        %322 = vmatprep.mubr.f32.mxu0 0.0
        %323 = vmatmul.mubr.f32.gmra.mxu0 %v229
        %v324 = vpop.f32.mrf.mxu0
        %v325 = vadd.f32 0.0, %v324
        %v326 = vpop.f32.mrf.mxu0
        %327 = vmatprep.mubr.f32.mxu0 0.0
        %328 = vmatmul.mubr.f32.gmra.mxu0 %v232
        %v329 = vpop.f32.mrf.mxu0
        %v330 = vadd.f32 0.0, %v329
        %v331 = vpop.f32.mrf.mxu0
        %332 = vmatprep.mubr.f32.mxu0 0.0
        %333 = vmatmul.mubr.f32.gmra.mxu0 %v235
        %v334 = vpop.f32.mrf.mxu0
        %v335 = vadd.f32 0.0, %v334
        %v336 = vpop.f32.mrf.mxu0
        %337 = vmatprep.mubr.f32.mxu0 0.0
        %338 = vmatmul.mubr.f32.gmra.mxu0 %v238
        %v339 = vpop.f32.mrf.mxu0
        %v340 = vadd.f32 0.0, %v339
        %v341 = vpop.f32.mrf.mxu0
        %342 = vmatprep.mubr.f32.mxu0 0.0
        %343 = vmatmul.mubr.f32.gmra.mxu0 %v241
        %v344 = vpop.f32.mrf.mxu0
        %v345 = vadd.f32 0.0, %v344
        %v346 = vpop.f32.mrf.mxu0
        %347 = vdwg.mxu0
        %vm348 = vcmask 523264
        %v350 = vsel %vm348, 1.0, 0
        %352 = vmatprep.subr.mxu0 0.0
        %353 = vmatpush1.msra.mxu0 0.0
        %354 = vmatprep.subr.mxu0 0.0
        %355 = vmatpush1.msra.mxu0 0.0
        %356 = vmatprep.subr.mxu0 0.0
        %357 = vmatpush1.msra.mxu0 0.0
        %358 = vmatprep.subr.mxu0 0.0
        %359 = vmatpush1.msra.mxu0 0.0
        %360 = vmatprep.subr.mxu0 0.0
        %361 = vmatpush1.msra.mxu0 0.0
        %362 = vmatprep.subr.mxu0 0.0
        %363 = vmatpush1.msra.mxu0 0.0
        %364 = vmatprep.subr.mxu0 0.0
        %365 = vmatpush1.msra.mxu0 0.0
        %366 = vmatprep.subr.mxu0 0.0
        %367 = vmatpush1.msra.mxu0 0.0
        %368 = vmatprep.subr.mxu0 0.0
        %369 = vmatpush1.msra.mxu0 %v345
        %370 = vmatprep.subr.mxu0 0.0
        %371 = vmatpush1.msra.mxu0 %v340
        %372 = vmatprep.subr.mxu0 0.0
        %373 = vmatpush1.msra.mxu0 %v335
        %374 = vmatprep.subr.mxu0 0.0
        %375 = vmatpush1.msra.mxu0 %v330
        %376 = vmatprep.subr.mxu0 0.0
        %377 = vmatpush1.msra.mxu0 %v325
        %378 = vmatprep.subr.mxu0 0.0
        %379 = vmatpush1.msra.mxu0 %v320
        %380 = vmatprep.subr.mxu0 0.0
        %381 = vmatpush1.msra.mxu0 %v315
        %382 = vmatprep.subr.mxu0 0.0
        %383 = vmatpush1.msra.mxu0 %v310
        %384 = vmatprep.subr.mxu0 0.0
        %385 = vmatpush2.msra.mxu0 0.0
        %386 = vmatprep.subr.mxu0 0.0
        %387 = vmatpush2.msra.mxu0 0.0
        %388 = vmatprep.subr.mxu0 0.0
        %389 = vmatpush2.msra.mxu0 0.0
        %390 = vmatprep.subr.mxu0 0.0
        %391 = vmatpush2.msra.mxu0 0.0
        %392 = vmatprep.subr.mxu0 0.0
        %393 = vmatpush2.msra.mxu0 0.0
        %394 = vmatprep.subr.mxu0 0.0
        %395 = vmatpush2.msra.mxu0 0.0
        %396 = vmatprep.subr.mxu0 0.0
        %397 = vmatpush2.msra.mxu0 0.0
        %398 = vmatprep.subr.mxu0 0.0
        %399 = vmatpush2.msra.mxu0 0.0
        %400 = vmatprep.subr.mxu0 0.0
        %401 = vmatpush2.msra.mxu0 0.0
        %402 = vmatprep.subr.mxu0 0.0
        %403 = vmatpush2.msra.mxu0 0.0
        %404 = vmatprep.subr.mxu0 0.0
        %405 = vmatpush2.msra.mxu0 0.0
        %406 = vmatprep.subr.mxu0 0.0
        %407 = vmatpush2.msra.mxu0 0.0
        %408 = vmatprep.subr.mxu0 0.0
        %409 = vmatpush2.msra.mxu0 0.0
        %410 = vmatprep.subr.mxu0 0.0
        %411 = vmatpush2.msra.mxu0 0.0
        %412 = vmatprep.subr.mxu0 0.0
        %413 = vmatpush2.msra.mxu0 0.0
        %414 = vmatprep.subr.mxu0 0.0
        %415 = vmatpush2.msra.mxu0 0.0
        %416 = vmatprep.mubr.f32.mxu0 0.0
        %417 = vmatmul.mubr.f32.gmra.mxu0 %v350
        %v418 = vpop.f32.mrf.mxu0
        %v419 = vadd.f32 0.0, %v418
        %v420 = vpop.f32.mrf.mxu0
        %421 = vdwg.mxu0
        %v422 = vmul.f32 %v310, %v310
        %v423 = vmul.f32 %v315, %v315
        %v424 = vmul.f32 %v320, %v320
        %v425 = vmul.f32 %v325, %v325
        %v426 = vmul.f32 %v330, %v330
        %v427 = vmul.f32 %v335, %v335
        %v428 = vmul.f32 %v340, %v340
        %v429 = vmul.f32 %v345, %v345
        %430 = vmatprep.subr.mxu0 0.0
        %431 = vmatpush1.msra.mxu0 0.0
        %432 = vmatprep.subr.mxu0 0.0
        %433 = vmatpush1.msra.mxu0 0.0
        %434 = vmatprep.subr.mxu0 0.0
        %435 = vmatpush1.msra.mxu0 0.0
        %436 = vmatprep.subr.mxu0 0.0
        %437 = vmatpush1.msra.mxu0 0.0
        %438 = vmatprep.subr.mxu0 0.0
        %439 = vmatpush1.msra.mxu0 0.0
        %440 = vmatprep.subr.mxu0 0.0
        %441 = vmatpush1.msra.mxu0 0.0
        %442 = vmatprep.subr.mxu0 0.0
        %443 = vmatpush1.msra.mxu0 0.0
        %444 = vmatprep.subr.mxu0 0.0
        %445 = vmatpush1.msra.mxu0 0.0
        %446 = vmatprep.subr.mxu0 0.0
        %447 = vmatpush1.msra.mxu0 %v429
        %448 = vmatprep.subr.mxu0 0.0
        %449 = vmatpush1.msra.mxu0 %v428
        %450 = vmatprep.subr.mxu0 0.0
        %451 = vmatpush1.msra.mxu0 %v427
        %452 = vmatprep.subr.mxu0 0.0
        %453 = vmatpush1.msra.mxu0 %v426
        %454 = vmatprep.subr.mxu0 0.0
        %455 = vmatpush1.msra.mxu0 %v425
        %456 = vmatprep.subr.mxu0 0.0
        %457 = vmatpush1.msra.mxu0 %v424
        %458 = vmatprep.subr.mxu0 0.0
        %459 = vmatpush1.msra.mxu0 %v423
        %460 = vmatprep.subr.mxu0 0.0
        %461 = vmatpush1.msra.mxu0 %v422
        %462 = vmatprep.subr.mxu0 0.0
        %463 = vmatpush2.msra.mxu0 0.0
        %464 = vmatprep.subr.mxu0 0.0
        %465 = vmatpush2.msra.mxu0 0.0
        %466 = vmatprep.subr.mxu0 0.0
        %467 = vmatpush2.msra.mxu0 0.0
        %468 = vmatprep.subr.mxu0 0.0
        %469 = vmatpush2.msra.mxu0 0.0
        %470 = vmatprep.subr.mxu0 0.0
        %471 = vmatpush2.msra.mxu0 0.0
        %472 = vmatprep.subr.mxu0 0.0
        %473 = vmatpush2.msra.mxu0 0.0
        %474 = vmatprep.subr.mxu0 0.0
        %475 = vmatpush2.msra.mxu0 0.0
        %476 = vmatprep.subr.mxu0 0.0
        %477 = vmatpush2.msra.mxu0 0.0
        %478 = vmatprep.subr.mxu0 0.0
        %479 = vmatpush2.msra.mxu0 0.0
        %480 = vmatprep.subr.mxu0 0.0
        %481 = vmatpush2.msra.mxu0 0.0
        %482 = vmatprep.subr.mxu0 0.0
        %483 = vmatpush2.msra.mxu0 0.0
        %484 = vmatprep.subr.mxu0 0.0
        %485 = vmatpush2.msra.mxu0 0.0
        %486 = vmatprep.subr.mxu0 0.0
        %487 = vmatpush2.msra.mxu0 0.0
        %488 = vmatprep.subr.mxu0 0.0
        %489 = vmatpush2.msra.mxu0 0.0
        %490 = vmatprep.subr.mxu0 0.0
        %491 = vmatpush2.msra.mxu0 0.0
        %492 = vmatprep.subr.mxu0 0.0
        %493 = vmatpush2.msra.mxu0 0.0
        %494 = vmatprep.mubr.f32.mxu0 0.0
        %495 = vmatmul.mubr.f32.gmra.mxu0 %v350
        %v496 = vpop.f32.mrf.mxu0
        %v497 = vadd.f32 0.0, %v496
        %v498 = vpop.f32.mrf.mxu0
        %499 = vdwg.mxu0
        %p500 = scmp.eq.s32.totalorder %s26, 0
        // Predicated region
        $region29: #{tpu_custom_call.1} parent=27 // pred_check
          %p501 = pneg %p500
        $region30: #{tpu_custom_call.1} parent=27 // pred_check_branch
          %503 = sbr.rel (%p501) target = $region32
        $region31: #{tpu_custom_call.1} parent=27 // pred_region
          %504 = vst [vmem:[%s185] sm:$0xff] 0.0
          %505 = vst [vmem:[%s192] sm:$0xff] 0.0
        $region32: #{tpu_custom_call.1} parent=27 // pred_fallthru
          _
        %v506 = vld [vmem:[%s185] sm:$0xff]
        %v507 = vadd.f32 %v506, %v419
        %508 = vst [vmem:[%s185] sm:$0xff] %v507
        %v509 = vld [vmem:[%s192] sm:$0xff]
        %v510 = vadd.f32 %v509, %v497
        %511 = vst [vmem:[%s192] sm:$0xff] %v510
        %s512 = sand.u32 %s90, 1
        %s513 = scalar_lea.sflag [#allocation3], %s512
        %s514 = sand.u32 %s90, 1
        %s515 = smul.addr %s514, 8
        %s516 = scalar_lea.vmem [#allocation2], %s515
        %s517 = sand.u32 %s116, 1
        %s518 = scalar_lea.sflag [#allocation5], %s517
        %s519 = sand.u32 %s116, 1
        %s520 = smul.addr %s519, 8
        %s521 = scalar_lea.vmem [#allocation4], %s520
        // Predicated region
        $region33: #{tpu_custom_call.1} parent=27 // pred_check
          %p522 = pneg %p100
        $region34: #{tpu_custom_call.1} parent=27 // pred_check_branch
          %524 = sbr.rel (%p522) target = $region36
        $region35: #{tpu_custom_call.1} parent=27 // pred_region
          %s526 = ssub.s32 128, 128
          %527 = vsyncadd %s513, %s526
          %s528 = smul.addr %s25, 128
          %s529 = scalar_lea.hbm %s2, %s528
          %s531 = sshll.u32 %s516, 4
          %s532 = int_to_ptr.vmem [resolvable:$true] %s531
          %534 = dma.vmem_to_hbm [thread:$0]  %s532, 128, %s529, %s513
        $region36: #{tpu_custom_call.1} parent=27 // pred_fallthru
          _
        // Predicated region
        $region37: #{tpu_custom_call.1} parent=27 // pred_check
          %p535 = pneg %p126
        $region38: #{tpu_custom_call.1} parent=27 // pred_check_branch
          %537 = sbr.rel (%p535) target = $region40
        $region39: #{tpu_custom_call.1} parent=27 // pred_region
          %s539 = ssub.s32 128, 128
          %540 = vsyncadd %s518, %s539
          %s541 = smul.addr %s25, 128
          %s542 = scalar_lea.hbm %s3, %s541
          %s544 = sshll.u32 %s521, 4
          %s545 = int_to_ptr.vmem [resolvable:$true] %s544
          %547 = dma.vmem_to_hbm [thread:$0]  %s545, 128, %s542, %s518
        $region40: #{tpu_custom_call.1} parent=27 // pred_fallthru
          _
      $region28: #{tpu_custom_call.1} parent=5 // pred_fallthru
        _
      %p548 = scmp.le.s32.totalorder 2, %s16
      // Predicated region
      $region41: #{tpu_custom_call.1} parent=5 // pred_check
        %p549 = pneg %p548
      $region42: #{tpu_custom_call.1} parent=5 // pred_check_branch
        %551 = sbr.rel (%p549) target = $region44
      $region43: #{tpu_custom_call.1} parent=5 // pred_region
        %s552 = ssub.s32 %s16, 2
        // Predicated region
        $region45: #{tpu_custom_call.1} parent=43 // pred_check
          %p553 = pneg %p106
        $region46: #{tpu_custom_call.1} parent=43 // pred_check_branch
          %555 = sbr.rel (%p553) target = $region48
        $region47: #{tpu_custom_call.1} parent=43 // pred_region
          %s556 = sand.u32 %s91, 1
          %s557 = scalar_lea.sflag [#allocation3], %s556
          %s558 = sand.u32 %s91, 1
          %s559 = smul.addr %s558, 8
          %s560 = scalar_lea.vmem [#allocation2], %s559
          %561 = dma.done %s557, 128
        $region48: #{tpu_custom_call.1} parent=43 // pred_fallthru
          _
        // Predicated region
        $region49: #{tpu_custom_call.1} parent=43 // pred_check
          %p562 = pneg %p132
        $region50: #{tpu_custom_call.1} parent=43 // pred_check_branch
          %564 = sbr.rel (%p562) target = $region52
        $region51: #{tpu_custom_call.1} parent=43 // pred_region
          %s565 = sand.u32 %s117, 1
          %s566 = scalar_lea.sflag [#allocation5], %s565
          %s567 = sand.u32 %s117, 1
          %s568 = smul.addr %s567, 8
          %s569 = scalar_lea.vmem [#allocation4], %s568
          %570 = dma.done %s566, 128
        $region52: #{tpu_custom_call.1} parent=43 // pred_fallthru
          _
      $region44: #{tpu_custom_call.1} parent=5 // pred_fallthru
        _
    $region6: #{tpu_custom_call.1} parent=1 // loop_footer
      %s20 = sadd.s32 1, %s16
    $region7: #{tpu_custom_call.1} parent=1 // loop_footer_branch
      %15 = sbr.rel target = $region3
    $region8: #{tpu_custom_call.1} parent=1 // loop_exit
      _
    %571 = vsyncpa [#allocation3], 1
    %s572 = scalar_lea.sflag [#allocation3], 1
    %573 = vsyncpa %s572, 1
    %574 = vsyncpa [#allocation5], 1
    %s575 = scalar_lea.sflag [#allocation5], 1
    %576 = vsyncpa %s575, 1

</llo_original>
